<compile_context>
chip_gen: v7x
topology: tpu7x:2x2x1
jax: 0.10.0
libtpu: 0.0.40
codegen_flags: <defaults>
</compile_context>

<pallas_src>
import functools

import jax
import jax.numpy as jnp
from jax.experimental import pallas as pl
from jax.experimental.pallas import tpu as pltpu


def _round_up(x, m):
    return (x + m - 1) // m * m


def _prenorm_kernel(x_ref, w_ref, wsum_ref, b_ref, o_ref, *, eps, inv_c):
    # x_ref: (1, C, T) tile of pixels of one batch element; T is lane-dense.
    x = x_ref[0]                                               # (C, T) raw dtype
    xf = x.astype(jnp.float32)                                 # no-op for f32 inputs

    # Single stats sweep: mean and E[x^2] together (unbiased=False variance).
    mean = jnp.sum(xf, axis=0, keepdims=True) * inv_c          # (1, T)
    ex2 = jnp.sum(xf * xf, axis=0, keepdims=True) * inv_c      # (1, T)
    var = jnp.maximum(ex2 - mean * mean, 0.0)
    s = jax.lax.rsqrt(var + eps)                               # (1, T)

    # fn: 1x1 conv (LayerNorm gain already folded into w).  MXU matmul on the
    # raw tile with f32 accumulation; normalization applied post-matmul.
    # TODO(synk): for C <~ 16 an unrolled VPU multiply-accumulate would avoid
    # MXU push/pop latency, but the kernel is HBM-bound so it is not needed.
    wx = jnp.dot(w_ref[...], x, preferred_element_type=jnp.float32)   # (C, T)
    y = s * (wx - wsum_ref[...] * mean) + b_ref[...]
    o_ref[0] = y.astype(o_ref.dtype)


# Generous hard cap; the VMEM budget below is the real limiter.
_MAX_TILE_HW = 65536


def _vmem_budget():
    """(target_bytes, limit_bytes, two_tensorcores) per chip generation."""
    try:
        vmem_phys = int(pltpu.get_tpu_info().vmem_capacity_bytes)
    except Exception:
        # Unknown chip: conservative settings valid everywhere.
        return 24 * 1024 * 1024, 32 * 1024 * 1024, False
    if vmem_phys <= 64 * 1024 * 1024:
        # v7x: 64 MiB per TensorCore, 2 TCs share the parallel grid.
        return 24 * 1024 * 1024, 40 * 1024 * 1024, True
    # v5e / v6e: 128 MiB physical VMEM, single TensorCore.
    return 48 * 1024 * 1024, 64 * 1024 * 1024, False


def _pick_tile_hw(batch, n_channels, hw, x_itemsize, vmem_target, two_cores):
    """Balanced, lane-dense spatial tile sized from the VMEM budget."""
    if hw <= 128:
        return hw                                   # single full-extent block
    fixed = n_channels * n_channels * 4 + 2 * n_channels * 4   # W, rowsum(W), b
    # 2x double-buffered input + 2x double-buffered output tiles, plus ~4
    # full-tile f32 temporaries inside the body (stats pass, matmul result, y).
    per_col = 4 * n_channels * x_itemsize + 4 * n_channels * 4
    budget = max(vmem_target - fixed, 128 * per_col)
    max_tile = min((budget // per_col) // 128 * 128, _MAX_TILE_HW)
    max_tile = max(int(max_tile), 128)
    # Balanced tiles: split hw as evenly as possible instead of padding it up
    # to a multiple of a capped tile.
    n_tiles = pl.cdiv(hw, max_tile)
    # v7x: 2 TensorCores share the ("parallel","parallel") grid -> make sure
    # there are at least 2 blocks of work.  v5e/v6e skip the forced split.
    if two_cores and batch * n_tiles < 2:
        n_tiles = 2
    if n_tiles == 1:
        return hw
    return min(_round_up(pl.cdiv(hw, n_tiles), 128), hw)


def prenorm_conv1x1(x_nchw, g, w, b):
    """PreNorm forward: fn (1x1 conv) applied to channel LayerNorm of x.

    x_nchw: (B, C, H, W); g: (C,) LayerNorm gain; w: (C_out, C_in) squeezed
    1x1 conv weight; b: (C_out,) conv bias.
    """
    B, C, H, W = x_nchw.shape
    hw = H * W
    # torch: eps = 1e-5 for float32 inputs, 1e-3 otherwise.
    eps = 1e-5 if x_nchw.dtype == jnp.float32 else 1e-3

    # Fold the LayerNorm gain into the conv weight (exact: W @ (g*xn) == (W*g) @ xn).
    w_dtype = jnp.bfloat16 if x_nchw.dtype == jnp.bfloat16 else jnp.float32
    wg = (jnp.asarray(w, jnp.float32) * jnp.asarray(g, jnp.float32)[None, :]).astype(w_dtype)
    # Row-sums of the *stored* weights so the post-matmul mean correction is
    # consistent with what the MXU actually multiplies.
    wsum = jnp.sum(wg.astype(jnp.float32), axis=1, keepdims=True)       # (C, 1)
    b2 = jnp.asarray(b, jnp.float32).reshape(C, 1)

    vmem_target, vmem_limit, two_cores = _vmem_budget()
    tile_hw = _pick_tile_hw(B, C, hw, x_nchw.dtype.itemsize, vmem_target, two_cores)
    n_tiles = pl.cdiv(hw, tile_hw)

    # NCHW-native: only a free reshape (no transpose, no jnp.pad HBM round
    # trip).  A ragged last tile is handled by Pallas partial-block masking;
    # garbage tail columns never mix across pixels and are never written back.
    x_rows = x_nchw.reshape(B, C, hw)

    # TODO(synk): for very large C (resident W block alone > ~16 MiB) a K-axis
    # grid split of the weight matmul would be needed; W stays resident here.
    out = pl.pallas_call(
        functools.partial(_prenorm_kernel, eps=eps, inv_c=1.0 / C),
        out_shape=jax.ShapeDtypeStruct((B, C, hw), x_nchw.dtype),
        grid_spec=pltpu.PrefetchScalarGridSpec(
            num_scalar_prefetch=0,
            grid=(B, n_tiles),
            in_specs=[
                pl.BlockSpec((1, C, tile_hw), lambda bi, ti: (bi, 0, ti)),
                pl.BlockSpec((C, C), lambda bi, ti: (0, 0)),
                pl.BlockSpec((C, 1), lambda bi, ti: (0, 0)),
                pl.BlockSpec((C, 1), lambda bi, ti: (0, 0)),
            ],
            out_specs=pl.BlockSpec((1, C, tile_hw), lambda bi, ti: (bi, 0, ti)),
        ),
        compiler_params=pltpu.CompilerParams(
            dimension_semantics=("parallel", "parallel"),
            vmem_limit_bytes=vmem_limit,
        ),
    )(x_rows, wg, wsum, b2)

    return out.reshape(B, C, H, W)


def _prenorm_reference(x_nchw, g, w, b):
    x = x_nchw.astype(jnp.float32)
    eps = 1e-5 if x_nchw.dtype == jnp.float32 else 1e-3
    mean = jnp.mean(x, axis=1, keepdims=True)
    var = jnp.mean((x - mean) ** 2, axis=1, keepdims=True)
    xn = (x - mean) * jax.lax.rsqrt(var + eps) * g.reshape(1, -1, 1, 1)
    y = jnp.einsum("bchw,oc->bohw", xn, w.astype(jnp.float32)) + b.reshape(1, -1, 1, 1)
    return y


if __name__ == "__main__":
    B, C, H, W = 2, 4, 16, 16
    key = jax.random.PRNGKey(0)
    kx, kw, kb = jax.random.split(key, 3)

    x = jax.random.normal(kx, (B, C, H, W), dtype=jnp.float32)

    # Deterministic parameter init (per module __init__ shapes):
    g = jnp.ones((C,), dtype=jnp.float32)                       # LayerNorm.g == ones
    w = jax.random.normal(kw, (C, C), dtype=jnp.float32) * 0.1  # fn: Conv2d(C, C, 1) weight
    b = jax.random.normal(kb, (C,), dtype=jnp.float32) * 0.1    # fn bias

    out = prenorm_conv1x1(x, g, w, b)
    out = jax.block_until_ready(out)

    ref = _prenorm_reference(x, g, w, b)
    assert out.shape == (B, C, H, W)
    assert jnp.max(jnp.abs(out - ref)) < 2e-4

    print("KERNEL_OK")
</pallas_src>

<mosaic_0001>
module attributes {stable_mosaic.version = 11 : i64} {
  func.func @_prenorm_kernel(%arg0: i32, %arg1: i32, %arg2: memref<1x4x256xf32, #tpu.memory_space<vmem>>, %arg3: memref<4x4xf32, #tpu.memory_space<vmem>>, %arg4: memref<4x1xf32, #tpu.memory_space<vmem>>, %arg5: memref<4x1xf32, #tpu.memory_space<vmem>>, %arg6: memref<1x4x256xf32, #tpu.memory_space<vmem>>) attributes {dimension_semantics = [#tpu.dimension_semantics<parallel>, #tpu.dimension_semantics<parallel>], iteration_bounds = array<i64: 2, 1>, scalar_prefetch = 0 : i64, scratch_operands = 0 : i64, tpu.core_type = #tpu.core_type<tc>, window_params = [{transform_indices = @transform_0, window_bounds = array<i64: 1, 4, 256>}, {pipeline_mode = #tpu.pipeline_mode<synchronous>, transform_indices = @transform_1, window_bounds = array<i64: 4, 4>}, {pipeline_mode = #tpu.pipeline_mode<synchronous>, transform_indices = @transform_2, window_bounds = array<i64: 4, 1>}, {pipeline_mode = #tpu.pipeline_mode<synchronous>, transform_indices = @transform_3, window_bounds = array<i64: 4, 1>}, {transform_indices = @transform_4, window_bounds = array<i64: 1, 4, 256>}]} {
    %c0 = arith.constant 0 : index
    %c0_0 = arith.constant 0 : index
    %c0_1 = arith.constant 0 : index
    %0 = vector.load %arg2[%c0, %c0_0, %c0_1] : memref<1x4x256xf32, #tpu.memory_space<vmem>>, vector<1x4x256xf32>
    %1 = vector.shape_cast %0 : vector<1x4x256xf32> to vector<4x256xf32>
    %cst = arith.constant dense<0.000000e+00> : vector<256xf32>
    %2 = vector.multi_reduction <add>, %1, %cst [0] : vector<4x256xf32> to vector<256xf32>
    %3 = vector.shape_cast %2 : vector<256xf32> to vector<1x256xf32>
    %cst_2 = arith.constant 2.500000e-01 : f32
    %4 = vector.broadcast %cst_2 : f32 to vector<1x256xf32>
    %5 = arith.mulf %3, %4 : vector<1x256xf32>
    %6 = arith.mulf %1, %1 : vector<4x256xf32>
    %cst_3 = arith.constant dense<0.000000e+00> : vector<256xf32>
    %7 = vector.multi_reduction <add>, %6, %cst_3 [0] : vector<4x256xf32> to vector<256xf32>
    %8 = vector.shape_cast %7 : vector<256xf32> to vector<1x256xf32>
    %cst_4 = arith.constant 2.500000e-01 : f32
    %9 = vector.broadcast %cst_4 : f32 to vector<1x256xf32>
    %10 = arith.mulf %8, %9 : vector<1x256xf32>
    %11 = arith.mulf %5, %5 : vector<1x256xf32>
    %12 = arith.subf %10, %11 : vector<1x256xf32>
    %cst_5 = arith.constant 0.000000e+00 : f32
    %13 = vector.broadcast %cst_5 : f32 to vector<1x256xf32>
    %14 = arith.maximumf %12, %13 : vector<1x256xf32>
    %cst_6 = arith.constant 9.99999974E-6 : f32
    %15 = vector.broadcast %cst_6 : f32 to vector<1x256xf32>
    %16 = arith.addf %14, %15 : vector<1x256xf32>
    %17 = math.rsqrt %16 : vector<1x256xf32>
    %c0_7 = arith.constant 0 : index
    %c0_8 = arith.constant 0 : index
    %18 = vector.load %arg3[%c0_7, %c0_8] : memref<4x4xf32, #tpu.memory_space<vmem>>, vector<4x4xf32>
    %cst_9 = arith.constant dense<0.000000e+00> : vector<4x256xf32>
    %19 = tpu.matmul %18, %1, %cst_9 {dimension_numbers = #tpu.dot_dimension_numbers<[1], [0], [0], [1], [0, 0, 1, 1], [], []>} : vector<4x4xf32>, vector<4x256xf32>, vector<4x256xf32> -> vector<4x256xf32>
    %c0_10 = arith.constant 0 : index
    %c0_11 = arith.constant 0 : index
    %20 = vector.load %arg4[%c0_10, %c0_11] : memref<4x1xf32, #tpu.memory_space<vmem>>, vector<4x1xf32>
    %21 = vector.broadcast %20 : vector<4x1xf32> to vector<4x256xf32>
    %22 = vector.broadcast %5 : vector<1x256xf32> to vector<4x256xf32>
    %23 = arith.mulf %21, %22 : vector<4x256xf32>
    %24 = arith.subf %19, %23 : vector<4x256xf32>
    %25 = vector.broadcast %17 : vector<1x256xf32> to vector<4x256xf32>
    %26 = arith.mulf %25, %24 : vector<4x256xf32>
    %c0_12 = arith.constant 0 : index
    %c0_13 = arith.constant 0 : index
    %27 = vector.load %arg5[%c0_12, %c0_13] : memref<4x1xf32, #tpu.memory_space<vmem>>, vector<4x1xf32>
    %28 = vector.broadcast %27 : vector<4x1xf32> to vector<4x256xf32>
    %29 = arith.addf %26, %28 : vector<4x256xf32>
    %c0_14 = arith.constant 0 : index
    %c0_15 = arith.constant 0 : index
    %c0_16 = arith.constant 0 : index
    %30 = vector.load %arg6[%c0_14, %c0_15, %c0_16] : memref<1x4x256xf32, #tpu.memory_space<vmem>>, vector<1x4x256xf32>
    %31 = vector.shape_cast %30 : vector<1x4x256xf32> to vector<4x256xf32>
    %32 = vector.shape_cast %29 : vector<4x256xf32> to vector<1x4x256xf32>
    tpu.vector_store %arg6[%c0_14, %c0_15, %c0_16], %32 {strides = array<i32>} : memref<1x4x256xf32, #tpu.memory_space<vmem>>, vector<1x4x256xf32>,
    return
  }
  func.func @transform_0(%arg0: i32, %arg1: i32) -> (i32, i32, i32) {
    %c0_i32 = arith.constant 0 : i32
    %c0_i32_0 = arith.constant 0 : i32
    return %arg0, %c0_i32, %arg1 : i32, i32, i32
  }
  func.func @transform_1(%arg0: i32, %arg1: i32) -> (i32, i32) {
    %c0_i32 = arith.constant 0 : i32
    %c0_i32_0 = arith.constant 0 : i32
    %c0_i32_1 = arith.constant 0 : i32
    return %c0_i32, %c0_i32_0 : i32, i32
  }
  func.func @transform_2(%arg0: i32, %arg1: i32) -> (i32, i32) {
    %c0_i32 = arith.constant 0 : i32
    %c0_i32_0 = arith.constant 0 : i32
    %c0_i32_1 = arith.constant 0 : i32
    return %c0_i32, %c0_i32_0 : i32, i32
  }
  func.func @transform_3(%arg0: i32, %arg1: i32) -> (i32, i32) {
    %c0_i32 = arith.constant 0 : i32
    %c0_i32_0 = arith.constant 0 : i32
    %c0_i32_1 = arith.constant 0 : i32
    return %c0_i32, %c0_i32_0 : i32, i32
  }
  func.func @transform_4(%arg0: i32, %arg1: i32) -> (i32, i32, i32) {
    %c0_i32 = arith.constant 0 : i32
    %c0_i32_0 = arith.constant 0 : i32
    return %arg0, %c0_i32, %arg1 : i32, i32, i32
  }
}

</mosaic_0001>

<llo_original>
// kernel: tpu_custom_call.1
$region0: #{tpu_custom_call.1}
  #allocation0 [shape = 'u32[]', space=smem, size = 0x4, offset = 0x4, fixed_abs, tag = 'smem constant byte address 0x4 - core index']
  #allocation1 [shape = 'u32[144,128]{1,0:T(1,128)}', space=vmem, size = 0x12000, scoped, tag = 'internal scratch']
  %s0 = inlined_call_operand.hbm [shape: f32[2,4,256], index: 0, kind: input, shape index: {}]
  %s1 = inlined_call_operand.vmem [shape: f32[4,4], index: 1, kind: input, shape index: {}]
  %s2 = inlined_call_operand.vmem [shape: f32[4,1], index: 2, kind: input, shape index: {}]
  %s3 = inlined_call_operand.vmem [shape: f32[4,1], index: 3, kind: input, shape index: {}]
  %s4 = inlined_call_operand.hbm [shape: f32[2,4,256], index: 4, kind: output, shape index: {}]
  %s5 = sld [smem:[#allocation0]]
  $region53: #{tpu_custom_call.1} parent=0
    _
  %s7 = ssub.s32 1, %s5
  %s8 = scalar_select 0, %s7, %s5
  $region1: #{tpu_custom_call.1} parent=0
    #allocation2 [shape = 'u8[8192]{0}', space=vmem, size = 0x2000, scoped, tag = 'input window, operand 0']
    #allocation3 [shape = 's32[2]{0}', space=sflag, size = 0x8, scoped, tag = 'scoped memory for tpu_custom_call.1']
    #allocation4 [shape = 's32[2]{0}', space=sflag, size = 0x8, scoped, tag = 'scoped memory for tpu_custom_call.1']
    #allocation5 [shape = 'u8[8192]{0}', space=vmem, size = 0x2000, scoped, tag = 'output window, operand 0']
    %9 = vsyncpa [#allocation3], 0
    %s10 = scalar_lea.sflag [#allocation3], 1
    %11 = vsyncpa %s10, 0
    %12 = vsyncpa [#allocation4], 0
    %s13 = scalar_lea.sflag [#allocation4], 1
    %14 = vsyncpa %s13, 0
    loop: start=0, step=1, limit=4
    $region2: #{tpu_custom_call.1} parent=1 // loop_pre_header
      _
    $region3: #{tpu_custom_call.1} parent=1 // loop_header
      %s16 = sphi 0, %s20
      %p17 = scmp.ge.s32.totalorder %s16, 4
      %s23 = sphi 0, %s35
      %s24 = sphi 0, %s31
      %s25 = sphi 0, %s23
      %s26 = sphi 0, %s24
      %s27 = sphi 0, %s25
      %s28 = sphi 0, %s26
      %s40 = sphi 0, %s42
      %s43 = sphi 0, %s40
      %s44 = sphi 0, %s43
      %s60 = sphi 0, %s44
      %s64 = sphi 0, %s64
      %s66 = sphi 0, %s64
      %s67 = sphi 0, %s66
      %s81 = sphi 0, %s67
      %s85 = sphi 0, %s85
      %s87 = sphi 0, %s85
      %s88 = sphi 0, %s87
      %s102 = sphi 0, %s88
      %s106 = sphi 0, %s106
      %s108 = sphi 0, %s106
      %s109 = sphi 0, %s108
      %s123 = sphi 0, %s109
      %s131 = sphi 0, %s133
      %s134 = sphi 0, %s131
      %s135 = sphi 0, %s134
      %s151 = sphi 0, %s135
    $region4: #{tpu_custom_call.1} parent=1 // loop_header_branch
      %19 = sbr.rel (%p17) target = $region8
    $region5: #{tpu_custom_call.1} parent=1 // loop_body
      %s21 = ssub.s32 %s16, 1
      %s22 = ssub.s32 %s16, 2
      %s29 = sadd.s32 1, %s24
      %p30 = scmp.ge.s32.totalorder %s29, 1
      %s31 = scalar_select %p30, 0, %s29
      %s32 = sadd.s32 1, %s23
      %s33 = scalar_select %p30, %s32, %s23
      %p34 = scmp.ge.s32.totalorder %s33, 2
      %s35 = scalar_select %p34, 0, %s33
      %s36 = ssub.s32 %s23, %s35
      %s37 = ssub.s32 %s24, %s31
      %s38 = sor.u32 %s36, %s37
      %p39 = scmp.eq.s32.totalorder %s38, 0
      %s41 = sadd.s32 %s40, 1
      %s42 = scalar_select %p39, %s40, %s41
      %p45 = pneg %p39
      %p46 = scmp.eq.s32.totalorder %s16, 1
      %p47 = por %p45, %p46
      %p48 = scmp.ne.s32.totalorder %s40, %s43
      %p49 = scmp.eq.s32.totalorder %s16, 0
      %p50 = por %p48, %p49
      %p51 = scmp.ne.s32.totalorder %s40, %s43
      %p52 = scmp.eq.s32.totalorder %s21, 1
      %p53 = por %p51, %p52
      %p54 = scmp.ne.s32.totalorder %s43, %s44
      %p55 = scmp.eq.s32.totalorder %s21, 0
      %p56 = por %p54, %p55
      %p57 = scmp.ne.s32.totalorder %s43, %s44
      %p58 = scmp.eq.s32.totalorder %s22, 1
      %p59 = por %p57, %p58
      %p61 = scmp.ne.s32.totalorder %s44, %s60
      %p62 = scmp.eq.s32.totalorder %s22, 0
      %p63 = por %p61, %p62
      %s65 = sadd.s32 %s64, 1
      %p68 = scmp.eq.s32.totalorder %s16, 1
      %p69 = scmp.ne.s32.totalorder %s64, %s66
      %p70 = scmp.eq.s32.totalorder %s16, 0
      %p71 = por %p69, %p70
      %p72 = scmp.ne.s32.totalorder %s64, %s66
      %p73 = scmp.eq.s32.totalorder %s21, 1
      %p74 = por %p72, %p73
      %p75 = scmp.ne.s32.totalorder %s66, %s67
      %p76 = scmp.eq.s32.totalorder %s21, 0
      %p77 = por %p75, %p76
      %p78 = scmp.ne.s32.totalorder %s66, %s67
      %p79 = scmp.eq.s32.totalorder %s22, 1
      %p80 = por %p78, %p79
      %p82 = scmp.ne.s32.totalorder %s67, %s81
      %p83 = scmp.eq.s32.totalorder %s22, 0
      %p84 = por %p82, %p83
      %s86 = sadd.s32 %s85, 1
      %p89 = scmp.eq.s32.totalorder %s16, 1
      %p90 = scmp.ne.s32.totalorder %s85, %s87
      %p91 = scmp.eq.s32.totalorder %s16, 0
      %p92 = por %p90, %p91
      %p93 = scmp.ne.s32.totalorder %s85, %s87
      %p94 = scmp.eq.s32.totalorder %s21, 1
      %p95 = por %p93, %p94
      %p96 = scmp.ne.s32.totalorder %s87, %s88
      %p97 = scmp.eq.s32.totalorder %s21, 0
      %p98 = por %p96, %p97
      %p99 = scmp.ne.s32.totalorder %s87, %s88
      %p100 = scmp.eq.s32.totalorder %s22, 1
      %p101 = por %p99, %p100
      %p103 = scmp.ne.s32.totalorder %s88, %s102
      %p104 = scmp.eq.s32.totalorder %s22, 0
      %p105 = por %p103, %p104
      %s107 = sadd.s32 %s106, 1
      %p110 = scmp.eq.s32.totalorder %s16, 1
      %p111 = scmp.ne.s32.totalorder %s106, %s108
      %p112 = scmp.eq.s32.totalorder %s16, 0
      %p113 = por %p111, %p112
      %p114 = scmp.ne.s32.totalorder %s106, %s108
      %p115 = scmp.eq.s32.totalorder %s21, 1
      %p116 = por %p114, %p115
      %p117 = scmp.ne.s32.totalorder %s108, %s109
      %p118 = scmp.eq.s32.totalorder %s21, 0
      %p119 = por %p117, %p118
      %p120 = scmp.ne.s32.totalorder %s108, %s109
      %p121 = scmp.eq.s32.totalorder %s22, 1
      %p122 = por %p120, %p121
      %p124 = scmp.ne.s32.totalorder %s109, %s123
      %p125 = scmp.eq.s32.totalorder %s22, 0
      %p126 = por %p124, %p125
      %s127 = ssub.s32 %s23, %s35
      %s128 = ssub.s32 %s24, %s31
      %s129 = sor.u32 %s127, %s128
      %p130 = scmp.eq.s32.totalorder %s129, 0
      %s132 = sadd.s32 %s131, 1
      %s133 = scalar_select %p130, %s131, %s132
      %p136 = pneg %p130
      %p137 = scmp.eq.s32.totalorder %s16, 1
      %p138 = por %p136, %p137
      %p139 = scmp.ne.s32.totalorder %s131, %s134
      %p140 = scmp.eq.s32.totalorder %s16, 0
      %p141 = por %p139, %p140
      %p142 = scmp.ne.s32.totalorder %s131, %s134
      %p143 = scmp.eq.s32.totalorder %s21, 1
      %p144 = por %p142, %p143
      %p145 = scmp.ne.s32.totalorder %s134, %s135
      %p146 = scmp.eq.s32.totalorder %s21, 0
      %p147 = por %p145, %p146
      %p148 = scmp.ne.s32.totalorder %s134, %s135
      %p149 = scmp.eq.s32.totalorder %s22, 1
      %p150 = por %p148, %p149
      %p152 = scmp.ne.s32.totalorder %s135, %s151
      %p153 = scmp.eq.s32.totalorder %s22, 0
      %p154 = por %p152, %p153
      %p155 = scmp.le.s32.totalorder 1, %s16
      %p156 = scmp.lt.s32.totalorder %s16, 3
      %p157 = pnand %p155, %p156
      %p158 = pneg %p157
      // Predicated region
      $region9: #{tpu_custom_call.1} parent=5 // pred_check
        _
      $region10: #{tpu_custom_call.1} parent=5 // pred_check_branch
        %160 = sbr.rel (%p157) target = $region12
      $region11: #{tpu_custom_call.1} parent=5 // pred_region
        %s161 = ssub.s32 %s16, 1
        // Predicated region
        $region13: #{tpu_custom_call.1} parent=11 // pred_check
          %p162 = pneg %p77
        $region14: #{tpu_custom_call.1} parent=11 // pred_check_branch
          %164 = sbr.rel (%p162) target = $region16
        $region15: #{tpu_custom_call.1} parent=11 // pred_region
          _
        $region16: #{tpu_custom_call.1} parent=11 // pred_fallthru
          _
        // Predicated region
        $region17: #{tpu_custom_call.1} parent=11 // pred_check
          %p165 = pneg %p98
        $region18: #{tpu_custom_call.1} parent=11 // pred_check_branch
          %167 = sbr.rel (%p165) target = $region20
        $region19: #{tpu_custom_call.1} parent=11 // pred_region
          _
        $region20: #{tpu_custom_call.1} parent=11 // pred_fallthru
          _
        // Predicated region
        $region21: #{tpu_custom_call.1} parent=11 // pred_check
          %p168 = pneg %p119
        $region22: #{tpu_custom_call.1} parent=11 // pred_check_branch
          %170 = sbr.rel (%p168) target = $region24
        $region23: #{tpu_custom_call.1} parent=11 // pred_region
          _
        $region24: #{tpu_custom_call.1} parent=11 // pred_fallthru
          _
      $region12: #{tpu_custom_call.1} parent=5 // pred_fallthru
        _
      %p171 = scmp.lt.s32.totalorder %s16, 2
      // Predicated region
      $region25: #{tpu_custom_call.1} parent=5 // pred_check
        %p172 = pneg %p171
      $region26: #{tpu_custom_call.1} parent=5 // pred_check_branch
        %174 = sbr.rel (%p172) target = $region28
      $region27: #{tpu_custom_call.1} parent=5 // pred_region
        // Predicated region
        $region29: #{tpu_custom_call.1} parent=27 // pred_check
          %p175 = pneg %p50
        $region30: #{tpu_custom_call.1} parent=27 // pred_check_branch
          %177 = sbr.rel (%p175) target = $region32
        $region31: #{tpu_custom_call.1} parent=27 // pred_region
          %s178 = sand.u32 %s40, 1
          %s179 = scalar_lea.sflag [#allocation3], %s178
          %s180 = sand.u32 %s40, 1
          %s181 = smul.addr %s180, 8
          %s182 = scalar_lea.vmem [#allocation2], %s181
          %s183 = smul.u32 2, %s24
          %s185 = ssub.s32 128, 128
          %186 = vsyncadd %s179, %s185
          %s187 = smul.addr %s23, 2
          %s188 = sadd.s32 %s183, %s187
          %s189 = smul.addr %s188, 64
          %s190 = scalar_lea.hbm %s0, %s189
          %s192 = sshll.u32 %s182, 4
          %s193 = int_to_ptr.vmem [resolvable:$true] %s192
          %195 = dma.hbm_to_vmem [thread:$0]  %s190, 128, %s193, %s179
        $region32: #{tpu_custom_call.1} parent=27 // pred_fallthru
          _
      $region28: #{tpu_custom_call.1} parent=5 // pred_fallthru
        _
      %p196 = scmp.le.s32.totalorder 1, %s16
      %p197 = scmp.lt.s32.totalorder %s16, 3
      %p198 = pnand %p196, %p197
      %p199 = pneg %p198
      // Predicated region
      $region33: #{tpu_custom_call.1} parent=5 // pred_check
        _
      $region34: #{tpu_custom_call.1} parent=5 // pred_check_branch
        %201 = sbr.rel (%p198) target = $region36
      $region35: #{tpu_custom_call.1} parent=5 // pred_region
        %s202 = ssub.s32 %s16, 1
        %s203 = sand.u32 %s43, 1
        %s204 = scalar_lea.sflag [#allocation3], %s203
        %s205 = sand.u32 %s43, 1
        %s206 = smul.addr %s205, 8
        %s207 = scalar_lea.vmem [#allocation2], %s206
        // Predicated region
        $region37: #{tpu_custom_call.1} parent=35 // pred_check
          %p208 = pneg %p56
        $region38: #{tpu_custom_call.1} parent=35 // pred_check_branch
          %210 = sbr.rel (%p208) target = $region40
        $region39: #{tpu_custom_call.1} parent=35 // pred_region
          %211 = dma.done %s204, 128
        $region40: #{tpu_custom_call.1} parent=35 // pred_fallthru
          _
        %s212 = sand.u32 %s43, 1
        %s213 = scalar_lea.sflag [#allocation3], %s212
        %s214 = sand.u32 %s43, 1
        %s215 = smul.addr %s214, 8
        %s216 = scalar_lea.vmem [#allocation2], %s215
        %p217 = pneg %p56
        %p218 = pneg %p53
        %p219 = pneg %p77
        %p220 = pneg %p74
        %p221 = pneg %p98
        %p222 = pneg %p95
        %p223 = pneg %p119
        %p224 = pneg %p116
        %p225 = pneg %p147
        %p226 = pneg %p144
        %s227 = sand.u32 %s134, 1
        %s228 = scalar_lea.sflag [#allocation4], %s227
        %s229 = sand.u32 %s134, 1
        %s230 = smul.addr %s229, 8
        %s231 = scalar_lea.vmem [#allocation5], %s230
        %s232 = smul.u32 2, %s26
        %s233 = smul.u32 2, %s26
        %v234 = vld [vmem:[%s207] sm:$0xff]
        %v236 = vcombine.high %v234, %v234
        %vm238 = vcmask 1043456
        %v239 = vsel %vm238, %v234, 0.0
        %v240 = vrot.slane %v239, 4
        %v241 = vadd.f32 %v239, %v240
        %v242 = vrot.slane %v241, 2
        %v243 = vadd.f32 %v241, %v242
        %v244 = vrot.slane %v243, 1
        %v245 = vadd.f32 %v243, %v244
        %v246 = vsel %vm238, %v236, 0.0
        %v247 = vrot.slane %v246, 4
        %v248 = vadd.f32 %v246, %v247
        %v249 = vrot.slane %v248, 2
        %v250 = vadd.f32 %v248, %v249
        %v251 = vrot.slane %v250, 1
        %v252 = vadd.f32 %v250, %v251
        %v253 = vmul.f32 %v245, 0.25
        %v254 = vmul.f32 %v252, 0.25
        %v255 = vmul.f32 %v234, %v234
        %v257 = vcombine.high %v255, %v255
        %v259 = vsel %vm238, %v255, 0.0
        %v260 = vrot.slane %v259, 4
        %v261 = vadd.f32 %v259, %v260
        %v262 = vrot.slane %v261, 2
        %v263 = vadd.f32 %v261, %v262
        %v264 = vrot.slane %v263, 1
        %v265 = vadd.f32 %v263, %v264
        %v266 = vsel %vm238, %v257, 0.0
        %v267 = vrot.slane %v266, 4
        %v268 = vadd.f32 %v266, %v267
        %v269 = vrot.slane %v268, 2
        %v270 = vadd.f32 %v268, %v269
        %v271 = vrot.slane %v270, 1
        %v272 = vadd.f32 %v270, %v271
        %v273 = vmul.f32 %v265, 0.25
        %v274 = vmul.f32 %v272, 0.25
        %v275 = vmul.f32 %v253, %v253
        %v276 = vmul.f32 %v254, %v254
        %v277 = vsub.f32 %v273, %v275
        %v278 = vsub.f32 %v274, %v276
        %v279 = vmax.f32 %v277, 0.0
        %v280 = vmax.f32 %v278, 0.0
        %v281 = vadd.f32 %v279, 1e-05
        %v282 = vadd.f32 %v280, 1e-05
        %v283 = vrsqrt.pop %v281
        %v284 = vrsqrt.pop %v282
        %v285 = vld [vmem:[%s1] sm:$0xf]
        %vm286 = vcmask 31744
        %v288 = vsel %vm286, %v285, 0
        %v290 = vsel %vm238, %v234, 0
        %v292 = vsel %vm238, %v236, 0
        %294 = vmatprep.subr.mxu0 %v292
        %295 = vmatpush1.msra.mxu0 %v290
        %296 = vmatprep.subr.mxu0 0.0
        %297 = vmatpush1.msra.mxu0 0.0
        %298 = vmatprep.subr.mxu0 0.0
        %299 = vmatpush1.msra.mxu0 0.0
        %300 = vmatprep.subr.mxu0 0.0
        %301 = vmatpush1.msra.mxu0 0.0
        %302 = vmatprep.subr.mxu0 0.0
        %303 = vmatpush1.msra.mxu0 0.0
        %304 = vmatprep.subr.mxu0 0.0
        %305 = vmatpush1.msra.mxu0 0.0
        %306 = vmatprep.subr.mxu0 0.0
        %307 = vmatpush1.msra.mxu0 0.0
        %308 = vmatprep.subr.mxu0 0.0
        %309 = vmatpush1.msra.mxu0 0.0
        %310 = vmatprep.subr.mxu0 0.0
        %311 = vmatpush1.msra.mxu0 0.0
        %312 = vmatprep.subr.mxu0 0.0
        %313 = vmatpush1.msra.mxu0 0.0
        %314 = vmatprep.subr.mxu0 0.0
        %315 = vmatpush1.msra.mxu0 0.0
        %316 = vmatprep.subr.mxu0 0.0
        %317 = vmatpush1.msra.mxu0 0.0
        %318 = vmatprep.subr.mxu0 0.0
        %319 = vmatpush1.msra.mxu0 0.0
        %320 = vmatprep.subr.mxu0 0.0
        %321 = vmatpush1.msra.mxu0 0.0
        %322 = vmatprep.subr.mxu0 0.0
        %323 = vmatpush1.msra.mxu0 0.0
        %324 = vmatprep.subr.mxu0 0.0
        %325 = vmatpush1.msra.mxu0 0.0
        %326 = vmatprep.subr.mxu0 0.0
        %327 = vmatpush1.msra.mxu0 0.0
        %328 = vmatprep.subr.mxu0 0.0
        %329 = vmatpush1.msra.mxu0 0.0
        %330 = vmatprep.subr.mxu0 0.0
        %331 = vmatpush1.msra.mxu0 0.0
        %332 = vmatprep.subr.mxu0 0.0
        %333 = vmatpush1.msra.mxu0 0.0
        %334 = vmatprep.subr.mxu0 0.0
        %335 = vmatpush1.msra.mxu0 0.0
        %336 = vmatprep.subr.mxu0 0.0
        %337 = vmatpush1.msra.mxu0 0.0
        %338 = vmatprep.subr.mxu0 0.0
        %339 = vmatpush1.msra.mxu0 0.0
        %340 = vmatprep.subr.mxu0 0.0
        %341 = vmatpush1.msra.mxu0 0.0
        %342 = vmatprep.subr.mxu0 0.0
        %343 = vmatpush1.msra.mxu0 0.0
        %344 = vmatprep.subr.mxu0 0.0
        %345 = vmatpush1.msra.mxu0 0.0
        %346 = vmatprep.subr.mxu0 0.0
        %347 = vmatpush1.msra.mxu0 0.0
        %348 = vmatprep.subr.mxu0 0.0
        %349 = vmatpush1.msra.mxu0 0.0
        %350 = vmatprep.subr.mxu0 0.0
        %351 = vmatpush1.msra.mxu0 0.0
        %352 = vmatprep.subr.mxu0 0.0
        %353 = vmatpush1.msra.mxu0 0.0
        %354 = vmatprep.subr.mxu0 0.0
        %355 = vmatpush1.msra.mxu0 0.0
        %356 = vmatprep.subr.mxu0 0.0
        %357 = vmatpush1.msra.mxu0 0.0
        %358 = vmatprep.mubr.f32.mxu0 0.0
        %359 = vmatmul.mubr.f32.gmra.mrb[0].mxu0 %v288
        %v360 = vpop.f32.mrb[0].mxu0
        %v361 = vadd.f32 0.0, %v360
        %v362 = vpop.f32.mrb[0].mxu0
        %v363 = vadd.f32 0.0, %v362
        %364 = vdwg.mxu0
        %v365 = vld [vmem:[%s2] sm:$0xf]
        %367 = vset.pattern.permute.xlu0 0
        %368 = vperm.xlu0 %367, %v365
        %v369 = vpop.permute.xlu0 %368
        %v371 = vmul.f32 %v369, %v253
        %v372 = vmul.f32 %v369, %v254
        %v373 = vsub.f32 %v361, %v371
        %v374 = vsub.f32 %v363, %v372
        %v375 = vmul.f32 %v283, %v373
        %v376 = vmul.f32 %v284, %v374
        %v377 = vld [vmem:[%s3] sm:$0xf]
        %379 = vset.pattern.permute.xlu0 0
        %380 = vperm.xlu0 %379, %v377
        %v381 = vpop.permute.xlu0 %380
        %v383 = vadd.f32 %v375, %v381
        %v384 = vadd.f32 %v376, %v381
        %v387 = vcombine.low %v383, %v384
        %389 = vst [vmem:[%s231] sm:$0xff] %v387
        %s390 = sand.u32 %s134, 1
        %s391 = scalar_lea.sflag [#allocation4], %s390
        %s392 = sand.u32 %s134, 1
        %s393 = smul.addr %s392, 8
        %s394 = scalar_lea.vmem [#allocation5], %s393
        // Predicated region
        $region41: #{tpu_custom_call.1} parent=35 // pred_check
          %p395 = pneg %p144
        $region42: #{tpu_custom_call.1} parent=35 // pred_check_branch
          %397 = sbr.rel (%p395) target = $region44
        $region43: #{tpu_custom_call.1} parent=35 // pred_region
          %s398 = smul.u32 2, %s26
          %s400 = ssub.s32 128, 128
          %401 = vsyncadd %s391, %s400
          %s402 = smul.addr %s25, 2
          %s403 = sadd.s32 %s398, %s402
          %s404 = smul.addr %s403, 64
          %s405 = scalar_lea.hbm %s4, %s404
          %s407 = sshll.u32 %s394, 4
          %s408 = int_to_ptr.vmem [resolvable:$true] %s407
          %410 = dma.vmem_to_hbm [thread:$0]  %s408, 128, %s405, %s391
        $region44: #{tpu_custom_call.1} parent=35 // pred_fallthru
          _
      $region36: #{tpu_custom_call.1} parent=5 // pred_fallthru
        _
      %p411 = scmp.le.s32.totalorder 2, %s16
      // Predicated region
      $region45: #{tpu_custom_call.1} parent=5 // pred_check
        %p412 = pneg %p411
      $region46: #{tpu_custom_call.1} parent=5 // pred_check_branch
        %414 = sbr.rel (%p412) target = $region48
      $region47: #{tpu_custom_call.1} parent=5 // pred_region
        %s415 = ssub.s32 %s16, 2
        // Predicated region
        $region49: #{tpu_custom_call.1} parent=47 // pred_check
          %p416 = pneg %p150
        $region50: #{tpu_custom_call.1} parent=47 // pred_check_branch
          %418 = sbr.rel (%p416) target = $region52
        $region51: #{tpu_custom_call.1} parent=47 // pred_region
          %s419 = sand.u32 %s135, 1
          %s420 = scalar_lea.sflag [#allocation4], %s419
          %s421 = sand.u32 %s135, 1
          %s422 = smul.addr %s421, 8
          %s423 = scalar_lea.vmem [#allocation5], %s422
          %424 = dma.done %s420, 128
        $region52: #{tpu_custom_call.1} parent=47 // pred_fallthru
          _
      $region48: #{tpu_custom_call.1} parent=5 // pred_fallthru
        _
    $region6: #{tpu_custom_call.1} parent=1 // loop_footer
      %s20 = sadd.s32 1, %s16
    $region7: #{tpu_custom_call.1} parent=1 // loop_footer_branch
      %15 = sbr.rel target = $region3
    $region8: #{tpu_custom_call.1} parent=1 // loop_exit
      _
    %425 = vsyncpa [#allocation3], 1
    %s426 = scalar_lea.sflag [#allocation3], 1
    %427 = vsyncpa %s426, 1
    %428 = vsyncpa [#allocation4], 1
    %s429 = scalar_lea.sflag [#allocation4], 1
    %430 = vsyncpa %s429, 1

</llo_original>
